<compile_context>
chip_gen: v6e
topology: v6e:2x2x1
jax: 0.10.0
libtpu: 0.0.40
codegen_flags: <defaults>
</compile_context>

<pallas_src>
import jax
import jax.numpy as jnp
from jax.experimental import pallas as pl
from jax.experimental.pallas import tpu as pltpu

DQNHIDDEN = 256
N_ACTIONS1 = 5
N_STATES1 = 7

K_PAD = 8        # contraction dim padded 7 -> 8 (full sublane group)
N_PAD = 128      # layer-2 output lanes padded 5 -> 128 (lane-dense matmul)
N_OUT_PAD = 8    # action-major rows written to HBM (5 actions padded to 8)


def _round_up(x, m):
    return ((x + m - 1) // m) * m


def net1_kernel(x_ref, w1_ref, b1_ref, w2_ref, b2_ref, o_ref):
    # Layer 1: (TB, 8) @ (8, 256) -> (TB, 256); f32 accumulate, bias+ReLU in f32.
    h = jnp.dot(x_ref[...], w1_ref[...], preferred_element_type=jnp.float32)
    h = jnp.maximum(h + b1_ref[...], 0.0)
    # Layer 2: (TB, 256) @ (256, 128) -> (TB, 128); f32 accumulate + f32 bias.
    y = jnp.dot(h.astype(w2_ref.dtype), w2_ref[...],
                preferred_element_type=jnp.float32)
    y = y + b2_ref[...]
    # Action-major, lane-dense store: XLU transpose, keep first 8 sublanes.
    # Writes (8, TB) instead of (TB, 128) -> ~16x less output writeback.
    o_ref[...] = jnp.transpose(y)[:N_OUT_PAD, :].astype(o_ref.dtype)


def prepare_params(w1, b1, w2, b2, *, weights_dtype=jnp.bfloat16):
    """Pad/cast parameters ONCE (hoisted out of the per-step forward).

    w1: (7, 256)   b1: (1, 256) or (256,)   w2: (256, 5)   b2: (1, 5) or (5,)
    weights_dtype: jnp.bfloat16 (recommended; MXU-native on v5e/v6e/v7x) or
                   jnp.float32.  Accumulation / bias / ReLU stay f32 either way.
    Zero padding keeps the math identical on the real rows/columns.
    """
    w1p = jnp.zeros((K_PAD, DQNHIDDEN), weights_dtype)
    w1p = w1p.at[:N_STATES1, :].set(w1.astype(weights_dtype))
    w2p = jnp.zeros((DQNHIDDEN, N_PAD), weights_dtype)
    w2p = w2p.at[:, :N_ACTIONS1].set(w2.astype(weights_dtype))
    b1p = b1.astype(jnp.float32).reshape(1, DQNHIDDEN)
    b2p = jnp.zeros((1, N_PAD), jnp.float32)
    b2p = b2p.at[:, :N_ACTIONS1].set(b2.astype(jnp.float32).reshape(1, N_ACTIONS1))
    return w1p, b1p, w2p, b2p


def _choose_tiling(batch, block_b, min_parallel_rows):
    """Pick (TB, n_steps): small padding, and >= 2 parallel steps on big batches
    so the v7x megacore actually uses both TensorCores."""
    b8 = _round_up(batch, 8)
    if b8 < min_parallel_rows:
        return b8, 1                         # single tile == full array (no lane constraint)
    n_steps = max(2, pl.cdiv(b8, block_b))   # >= 2 steps for megacore sharding
    tb = _round_up(pl.cdiv(b8, n_steps), 128)  # lane-dense output blocks need TB % 128 == 0
    n_steps = pl.cdiv(b8, tb)
    return tb, n_steps


def net1_forward(x, w1p, b1p, w2p, b2p, *, block_b=2048, min_parallel_rows=512):
    """x: (B, 7) float32.  w1p/b1p/w2p/b2p: outputs of prepare_params.

    Returns (B, 5) f32 Q-values; identical to the PyTorch forward with f32
    weights, near-identical with bf16 weights (f32 accumulation).
    block_b: max batch tile (1024–4096 recommended for large B).
    """
    B = x.shape[0]
    TB, n_steps = _choose_tiling(B, block_b, min_parallel_rows)
    Bp = TB * n_steps

    # Pad x: batch -> Bp (zeros), K 7 -> 8 (zeros); cast to the weight dtype so
    # both MXU operands match (bf16 hits the native-rate MXU path on all gens).
    xp = jnp.zeros((Bp, K_PAD), jnp.float32).at[:B, :N_STATES1].set(x)
    xp = xp.astype(w1p.dtype)

    w_bytes = (w1p.size + w2p.size) * w1p.dtype.itemsize
    cost = pl.CostEstimate(
        flops=2 * Bp * (K_PAD * DQNHIDDEN + DQNHIDDEN * N_PAD),
        transcendentals=0,
        bytes_accessed=(xp.size * xp.dtype.itemsize
                        + w_bytes
                        + (b1p.size + b2p.size) * 4
                        + N_OUT_PAD * Bp * 4),
    )

    out_t = pl.pallas_call(
        net1_kernel,
        out_shape=jax.ShapeDtypeStruct((N_OUT_PAD, Bp), jnp.float32),
        grid=(n_steps,),
        in_specs=[
            # Streaming batch tiles of x; weights/biases stay resident in VMEM.
            pl.BlockSpec((TB, K_PAD), lambda i: (i, 0)),
            pl.BlockSpec((K_PAD, DQNHIDDEN), lambda i: (0, 0)),
            pl.BlockSpec((1, DQNHIDDEN), lambda i: (0, 0)),
            pl.BlockSpec((DQNHIDDEN, N_PAD), lambda i: (0, 0)),
            pl.BlockSpec((1, N_PAD), lambda i: (0, 0)),
        ],
        # Action-major output: each step writes a lane-dense (8, TB) block.
        out_specs=pl.BlockSpec((N_OUT_PAD, TB), lambda i: (0, i)),
        compiler_params=pltpu.CompilerParams(
            dimension_semantics=("parallel",)),  # megacore shard on v7x
        cost_estimate=cost,
    )(xp, w1p, b1p, w2p, b2p)

    # (8, Bp) action-major -> (B, 5): only 5 of the 8 stored rows are read.
    return out_t[:N_ACTIONS1, :B].T


def init_params(key):
    """Deterministic init mirroring the PyTorch __init__.

    fc1.weight / out.weight ~ Normal(0, 0.1) (as in .normal_(0, 0.1));
    biases follow nn.Linear's default Uniform(-1/sqrt(fan_in), +1/sqrt(fan_in)).
    Weights are stored transposed: (in_features, out_features).
    """
    k1, k2, k3, k4 = jax.random.split(key, 4)
    w1 = 0.1 * jax.random.normal(k1, (N_STATES1, DQNHIDDEN), jnp.float32)
    bound1 = 1.0 / jnp.sqrt(jnp.float32(N_STATES1))
    b1 = jax.random.uniform(k2, (1, DQNHIDDEN), jnp.float32, -bound1, bound1)
    w2 = 0.1 * jax.random.normal(k3, (DQNHIDDEN, N_ACTIONS1), jnp.float32)
    bound2 = 1.0 / jnp.sqrt(jnp.float32(DQNHIDDEN))
    b2 = jax.random.uniform(k4, (1, N_ACTIONS1), jnp.float32, -bound2, bound2)
    return w1, b1, w2, b2


def net1_reference(x, w1, b1, w2, b2):
    h = jnp.maximum(x @ w1 + b1, 0.0)
    return h @ w2 + b2


if __name__ == "__main__":
    key = jax.random.PRNGKey(0)
    kx, kp, kx2 = jax.random.split(key, 3)
    w1, b1, w2, b2 = init_params(kp)

    # --- f32 path, tiny batch: single grid step, blocks equal full arrays. ---
    B = 8
    x = jax.random.normal(kx, (B, N_STATES1), jnp.float32)
    params_f32 = prepare_params(w1, b1, w2, b2, weights_dtype=jnp.float32)
    out = jax.block_until_ready(net1_forward(x, *params_f32))
    ref = net1_reference(x, w1, b1, w2, b2)
    assert out.shape == (B, N_ACTIONS1), out.shape
    assert jnp.allclose(out, ref, atol=1e-4, rtol=1e-4), "mismatch f32 (B=8)"

    # --- f32 path, multi-step batch grid (3 steps of TB=256, ragged padding),
    #     exercises the transposed multi-block store with tight tolerance. ---
    B2 = 600
    x2 = jax.random.normal(kx2, (B2, N_STATES1), jnp.float32)
    out2 = jax.block_until_ready(net1_forward(x2, *params_f32, block_b=256))
    ref2 = net1_reference(x2, w1, b1, w2, b2)
    assert out2.shape == (B2, N_ACTIONS1), out2.shape
    assert jnp.allclose(out2, ref2, atol=1e-4, rtol=1e-4), "mismatch f32 (B=600)"

    # --- bf16 weights (recommended default): same math with bf16 MXU operands
    #     and f32 accumulation; looser tolerance vs the f32 reference. ---
    params_bf16 = prepare_params(w1, b1, w2, b2)  # default weights_dtype=bf16
    out3 = jax.block_until_ready(net1_forward(x2, *params_bf16))
    assert out3.shape == (B2, N_ACTIONS1), out3.shape
    assert jnp.allclose(out3, ref2, atol=5e-2, rtol=5e-2), "mismatch bf16 (B=600)"

    print("KERNEL_OK")
</pallas_src>

<mosaic_0001>
module attributes {stable_mosaic.version = 11 : i64} {
  func.func @net1_kernel(%arg0: i32, %arg1: memref<8x8xf32, #tpu.memory_space<vmem>>, %arg2: memref<8x256xf32, #tpu.memory_space<vmem>>, %arg3: memref<1x256xf32, #tpu.memory_space<vmem>>, %arg4: memref<256x128xf32, #tpu.memory_space<vmem>>, %arg5: memref<1x128xf32, #tpu.memory_space<vmem>>, %arg6: memref<8x8xf32, #tpu.memory_space<vmem>>) attributes {dimension_semantics = [#tpu.dimension_semantics<parallel>], iteration_bounds = array<i64: 1>, scalar_prefetch = 0 : i64, scratch_operands = 0 : i64, tpu.core_type = #tpu.core_type<tc>, window_params = [{transform_indices = @transform_0, window_bounds = array<i64: 8, 8>}, {pipeline_mode = #tpu.pipeline_mode<synchronous>, transform_indices = @transform_1, window_bounds = array<i64: 8, 256>}, {pipeline_mode = #tpu.pipeline_mode<synchronous>, transform_indices = @transform_2, window_bounds = array<i64: 1, 256>}, {pipeline_mode = #tpu.pipeline_mode<synchronous>, transform_indices = @transform_3, window_bounds = array<i64: 256, 128>}, {pipeline_mode = #tpu.pipeline_mode<synchronous>, transform_indices = @transform_4, window_bounds = array<i64: 1, 128>}, {transform_indices = @transform_5, window_bounds = array<i64: 8, 8>}]} {
    %c0 = arith.constant 0 : index
    %c0_0 = arith.constant 0 : index
    %0 = vector.load %arg1[%c0, %c0_0] : memref<8x8xf32, #tpu.memory_space<vmem>>, vector<8x8xf32>
    %c0_1 = arith.constant 0 : index
    %c0_2 = arith.constant 0 : index
    %1 = vector.load %arg2[%c0_1, %c0_2] : memref<8x256xf32, #tpu.memory_space<vmem>>, vector<8x256xf32>
    %cst = arith.constant dense<0.000000e+00> : vector<8x256xf32>
    %2 = tpu.matmul %0, %1, %cst {dimension_numbers = #tpu.dot_dimension_numbers<[1], [0], [0], [1], [0, 0, 1, 1], [], []>} : vector<8x8xf32>, vector<8x256xf32>, vector<8x256xf32> -> vector<8x256xf32>
    %c0_3 = arith.constant 0 : index
    %c0_4 = arith.constant 0 : index
    %3 = vector.load %arg3[%c0_3, %c0_4] : memref<1x256xf32, #tpu.memory_space<vmem>>, vector<1x256xf32>
    %4 = vector.broadcast %3 : vector<1x256xf32> to vector<8x256xf32>
    %5 = arith.addf %2, %4 : vector<8x256xf32>
    %cst_5 = arith.constant 0.000000e+00 : f32
    %6 = vector.broadcast %cst_5 : f32 to vector<8x256xf32>
    %7 = arith.maximumf %5, %6 : vector<8x256xf32>
    %c0_6 = arith.constant 0 : index
    %c0_7 = arith.constant 0 : index
    %8 = vector.load %arg4[%c0_6, %c0_7] : memref<256x128xf32, #tpu.memory_space<vmem>>, vector<256x128xf32>
    %cst_8 = arith.constant dense<0.000000e+00> : vector<8x128xf32>
    %9 = tpu.matmul %7, %8, %cst_8 {dimension_numbers = #tpu.dot_dimension_numbers<[1], [0], [0], [1], [0, 0, 1, 1], [], []>} : vector<8x256xf32>, vector<256x128xf32>, vector<8x128xf32> -> vector<8x128xf32>
    %c0_9 = arith.constant 0 : index
    %c0_10 = arith.constant 0 : index
    %10 = vector.load %arg5[%c0_9, %c0_10] : memref<1x128xf32, #tpu.memory_space<vmem>>, vector<1x128xf32>
    %11 = vector.broadcast %10 : vector<1x128xf32> to vector<8x128xf32>
    %12 = arith.addf %9, %11 : vector<8x128xf32>
    %13 = tpu.transpose %12, [1, 0] : vector<8x128xf32> -> vector<128x8xf32>
    %14 = vector.extract_strided_slice %13 {offsets = [0, 0], sizes = [8, 8], strides = [1, 1]} : vector<128x8xf32> to vector<8x8xf32>
    %c0_11 = arith.constant 0 : index
    %c0_12 = arith.constant 0 : index
    %15 = vector.load %arg6[%c0_11, %c0_12] : memref<8x8xf32, #tpu.memory_space<vmem>>, vector<8x8xf32>
    tpu.vector_store %arg6[%c0_11, %c0_12], %14 {strides = array<i32>} : memref<8x8xf32, #tpu.memory_space<vmem>>, vector<8x8xf32>,
    return
  }
  func.func @transform_0(%arg0: i32) -> (i32, i32) {
    %c0_i32 = arith.constant 0 : i32
    %c0_i32_0 = arith.constant 0 : i32
    return %arg0, %c0_i32 : i32, i32
  }
  func.func @transform_1(%arg0: i32) -> (i32, i32) {
    %c0_i32 = arith.constant 0 : i32
    %c0_i32_0 = arith.constant 0 : i32
    %c0_i32_1 = arith.constant 0 : i32
    return %c0_i32, %c0_i32_0 : i32, i32
  }
  func.func @transform_2(%arg0: i32) -> (i32, i32) {
    %c0_i32 = arith.constant 0 : i32
    %c0_i32_0 = arith.constant 0 : i32
    %c0_i32_1 = arith.constant 0 : i32
    return %c0_i32, %c0_i32_0 : i32, i32
  }
  func.func @transform_3(%arg0: i32) -> (i32, i32) {
    %c0_i32 = arith.constant 0 : i32
    %c0_i32_0 = arith.constant 0 : i32
    %c0_i32_1 = arith.constant 0 : i32
    return %c0_i32, %c0_i32_0 : i32, i32
  }
  func.func @transform_4(%arg0: i32) -> (i32, i32) {
    %c0_i32 = arith.constant 0 : i32
    %c0_i32_0 = arith.constant 0 : i32
    %c0_i32_1 = arith.constant 0 : i32
    return %c0_i32, %c0_i32_0 : i32, i32
  }
  func.func @transform_5(%arg0: i32) -> (i32, i32) {
    %c0_i32 = arith.constant 0 : i32
    %c0_i32_0 = arith.constant 0 : i32
    return %c0_i32, %arg0 : i32, i32
  }
}

</mosaic_0001>

<llo_original>
// kernel: tpu_custom_call.1
$region0: #{tpu_custom_call.1}
  #allocation0 [shape = 'u32[]', space=smem, size = 0x4, offset = 0x4, fixed_abs, tag = 'smem constant byte address 0x4 - core index']
  #allocation1 [shape = 'u32[144,128]{1,0:T(1,128)}', space=vmem, size = 0x12000, scoped, tag = 'internal scratch']
  %s0 = inlined_call_operand.hbm [shape: f32[8,8], index: 0, kind: input, shape index: {}]
  %s1 = inlined_call_operand.hbm [shape: f32[8,256], index: 1, kind: input, shape index: {}]
  %s2 = inlined_call_operand.vmem [shape: f32[1,256], index: 2, kind: input, shape index: {}]
  %s3 = inlined_call_operand.hbm [shape: f32[256,128], index: 3, kind: input, shape index: {}]
  %s4 = inlined_call_operand.vmem [shape: f32[1,128], index: 4, kind: input, shape index: {}]
  %s5 = inlined_call_operand.hbm [shape: f32[8,8], index: 5, kind: output, shape index: {}]
  %s6 = sld [smem:[#allocation0]]
  $region42: #{tpu_custom_call.1} parent=0
    _
  %s8 = ssub.s32 1, %s6
  %s9 = scalar_select 0, %s8, %s6
  $region1: #{tpu_custom_call.1} parent=0
    #allocation2 [shape = 'u8[4096]{0}', space=vmem, size = 0x1000, scoped, tag = 'input window, operand 0, single buffered']
    #allocation3 [shape = 's32[1]{0}', space=sflag, size = 0x4, scoped, tag = 'scoped memory for tpu_custom_call.1']
    #allocation4 [shape = 's32[1]{0}', space=sflag, size = 0x4, scoped, tag = 'scoped memory for tpu_custom_call.1']
    #allocation5 [shape = 'u8[8192]{0}', space=vmem, size = 0x2000, scoped, tag = 'input window, operand 1, single buffered']
    #allocation6 [shape = 's32[1]{0}', space=sflag, size = 0x4, scoped, tag = 'scoped memory for tpu_custom_call.1']
    #allocation7 [shape = 'u8[131072]{0}', space=vmem, size = 0x20000, scoped, tag = 'input window, operand 3, single buffered']
    #allocation8 [shape = 'u8[4096]{0}', space=vmem, size = 0x1000, scoped, tag = 'output window, operand 0, single buffered']
    %10 = vsyncpa [#allocation3], 0
    %11 = vsyncpa [#allocation6], 0
    %12 = vsyncpa [#allocation4], 0
    // Predicated region
    $region2: #{tpu_custom_call.1} parent=1 // pred_check
      _
    $region3: #{tpu_custom_call.1} parent=1 // pred_check_branch
      %14 = sbr.rel (0) target = $region5
    $region4: #{tpu_custom_call.1} parent=1 // pred_region
      %s16 = ssub.s32 128, 128
      %17 = vsyncadd [#allocation3], %s16
      %s19 = sshll.u32 [#allocation2], 4
      %s20 = int_to_ptr.vmem [resolvable:$true] %s19
      %22 = dma.hbm_to_vmem [thread:$0]  %s0, 128, %s20, [#allocation3]
    $region5: #{tpu_custom_call.1} parent=1 // pred_fallthru
      _
    // Predicated region
    $region6: #{tpu_custom_call.1} parent=1 // pred_check
      _
    $region7: #{tpu_custom_call.1} parent=1 // pred_check_branch
      %24 = sbr.rel (0) target = $region9
    $region8: #{tpu_custom_call.1} parent=1 // pred_region
      %s26 = ssub.s32 256, 256
      %27 = vsyncadd [#allocation6], %s26
      %s29 = sshll.u32 [#allocation5], 4
      %s30 = int_to_ptr.vmem [resolvable:$true] %s29
      %32 = dma.hbm_to_vmem [thread:$0]  %s1, 256, %s30, [#allocation6]
    $region9: #{tpu_custom_call.1} parent=1 // pred_fallthru
      _
    // Predicated region
    $region10: #{tpu_custom_call.1} parent=1 // pred_check
      _
    $region11: #{tpu_custom_call.1} parent=1 // pred_check_branch
      %34 = sbr.rel (0) target = $region13
    $region12: #{tpu_custom_call.1} parent=1 // pred_region
      _
    $region13: #{tpu_custom_call.1} parent=1 // pred_fallthru
      _
    // Predicated region
    $region14: #{tpu_custom_call.1} parent=1 // pred_check
      _
    $region15: #{tpu_custom_call.1} parent=1 // pred_check_branch
      %36 = sbr.rel (0) target = $region17
    $region16: #{tpu_custom_call.1} parent=1 // pred_region
      %s38 = ssub.s32 4096, 4096
      %39 = vsyncadd [#allocation6], %s38
      %s40 = sshll.u32 [#allocation7], 4
      %s41 = int_to_ptr.vmem [resolvable:$true] %s40
      %46 = dma.hbm_to_vmem [thread:$0]  %s3, 4096, %s41, [#allocation6], 128, 128, 8
    $region17: #{tpu_custom_call.1} parent=1 // pred_fallthru
      _
    // Predicated region
    $region18: #{tpu_custom_call.1} parent=1 // pred_check
      _
    $region19: #{tpu_custom_call.1} parent=1 // pred_check_branch
      %48 = sbr.rel (0) target = $region21
    $region20: #{tpu_custom_call.1} parent=1 // pred_region
      _
    $region21: #{tpu_custom_call.1} parent=1 // pred_fallthru
      _
    // Predicated region
    $region22: #{tpu_custom_call.1} parent=1 // pred_check
      _
    $region23: #{tpu_custom_call.1} parent=1 // pred_check_branch
      %50 = sbr.rel (0) target = $region25
    $region24: #{tpu_custom_call.1} parent=1 // pred_region
      %51 = dma.done [#allocation3], 128
    $region25: #{tpu_custom_call.1} parent=1 // pred_fallthru
      _
    // Predicated region
    $region26: #{tpu_custom_call.1} parent=1 // pred_check
      _
    $region27: #{tpu_custom_call.1} parent=1 // pred_check_branch
      %53 = sbr.rel (0) target = $region29
    $region28: #{tpu_custom_call.1} parent=1 // pred_region
      %54 = dma.done [#allocation6], 256
    $region29: #{tpu_custom_call.1} parent=1 // pred_fallthru
      _
    // Predicated region
    $region30: #{tpu_custom_call.1} parent=1 // pred_check
      _
    $region31: #{tpu_custom_call.1} parent=1 // pred_check_branch
      %56 = sbr.rel (0) target = $region33
    $region32: #{tpu_custom_call.1} parent=1 // pred_region
      %57 = dma.done [#allocation6], 4096
    $region33: #{tpu_custom_call.1} parent=1 // pred_fallthru
      _
    %v58 = vld [vmem:[#allocation2] sm:$0xff]
    %v59 = vld [vmem:[#allocation5] sm:$0xff]
    %v60 = vld [vmem:[#allocation5 + $0x8] sm:$0xff]
    %v61 = vld [vmem:[%s2] sm:$0x3]
    %v63 = vlaneseq
    %v64 = vshrl.u32 %v63, 7
    %v65 = vsub.s32 0, %v64
    %v66 = vrot.slane %v61, %v65
    %v67 = vlaneseq
    %v68 = vshrl.u32 %v67, 7
    %v69 = vsub.s32 1, %v68
    %v70 = vrot.slane %v61, %v69
    %vm73 = vcmask 64512
    %v75 = vsel %vm73, %v58, 0
    %77 = vmatprep.subr.mxu0 0.0
    %78 = vmatpush1.msra.mxu0 0.0
    %79 = vmatprep.subr.mxu0 0.0
    %80 = vmatpush1.msra.mxu0 0.0
    %81 = vmatprep.subr.mxu0 0.0
    %82 = vmatpush1.msra.mxu0 0.0
    %83 = vmatprep.subr.mxu0 0.0
    %84 = vmatpush1.msra.mxu0 0.0
    %85 = vmatprep.subr.mxu0 0.0
    %86 = vmatpush1.msra.mxu0 0.0
    %87 = vmatprep.subr.mxu0 0.0
    %88 = vmatpush1.msra.mxu0 0.0
    %89 = vmatprep.subr.mxu0 0.0
    %90 = vmatpush1.msra.mxu0 0.0
    %91 = vmatprep.subr.mxu0 0.0
    %92 = vmatpush1.msra.mxu0 0.0
    %93 = vmatprep.subr.mxu0 0.0
    %94 = vmatpush1.msra.mxu0 0.0
    %95 = vmatprep.subr.mxu0 0.0
    %96 = vmatpush1.msra.mxu0 0.0
    %97 = vmatprep.subr.mxu0 0.0
    %98 = vmatpush1.msra.mxu0 0.0
    %99 = vmatprep.subr.mxu0 0.0
    %100 = vmatpush1.msra.mxu0 0.0
    %101 = vmatprep.subr.mxu0 0.0
    %102 = vmatpush1.msra.mxu0 0.0
    %103 = vmatprep.subr.mxu0 0.0
    %104 = vmatpush1.msra.mxu0 0.0
    %105 = vmatprep.subr.mxu0 0.0
    %106 = vmatpush1.msra.mxu0 0.0
    %107 = vmatprep.subr.mxu0 %v60
    %108 = vmatpush1.msra.mxu0 %v59
    %109 = vmatprep.subr.mxu0 0.0
    %110 = vmatpush2.msra.mxu0 0.0
    %111 = vmatprep.subr.mxu0 0.0
    %112 = vmatpush2.msra.mxu0 0.0
    %113 = vmatprep.subr.mxu0 0.0
    %114 = vmatpush2.msra.mxu0 0.0
    %115 = vmatprep.subr.mxu0 0.0
    %116 = vmatpush2.msra.mxu0 0.0
    %117 = vmatprep.subr.mxu0 0.0
    %118 = vmatpush2.msra.mxu0 0.0
    %119 = vmatprep.subr.mxu0 0.0
    %120 = vmatpush2.msra.mxu0 0.0
    %121 = vmatprep.subr.mxu0 0.0
    %122 = vmatpush2.msra.mxu0 0.0
    %123 = vmatprep.subr.mxu0 0.0
    %124 = vmatpush2.msra.mxu0 0.0
    %125 = vmatprep.subr.mxu0 0.0
    %126 = vmatpush2.msra.mxu0 0.0
    %127 = vmatprep.subr.mxu0 0.0
    %128 = vmatpush2.msra.mxu0 0.0
    %129 = vmatprep.subr.mxu0 0.0
    %130 = vmatpush2.msra.mxu0 0.0
    %131 = vmatprep.subr.mxu0 0.0
    %132 = vmatpush2.msra.mxu0 0.0
    %133 = vmatprep.subr.mxu0 0.0
    %134 = vmatpush2.msra.mxu0 0.0
    %135 = vmatprep.subr.mxu0 0.0
    %136 = vmatpush2.msra.mxu0 0.0
    %137 = vmatprep.subr.mxu0 0.0
    %138 = vmatpush2.msra.mxu0 0.0
    %139 = vmatprep.subr.mxu0 0.0
    %140 = vmatpush2.msra.mxu0 0.0
    %141 = vmatprep.mubr.f32.mxu0 0.0
    %142 = vmatmul.mubr.f32.gmra.mxu0 %v75
    %v143 = vpop.f32.mrf.mxu0
    %v144 = vadd.f32 %v66, %v143
    %v145 = vpop.f32.mrf.mxu0
    %v146 = vadd.f32 %v70, %v145
    %147 = vdwg.mxu0
    %v148 = vmax.f32 %v144, 0.0
    %v149 = vmax.f32 %v146, 0.0
    %v150 = vld [vmem:[#allocation7] sm:$0xff]
    %v151 = vld [vmem:[#allocation7 + $0x8] sm:$0xff]
    %v152 = vld [vmem:[#allocation7 + $0x10] sm:$0xff]
    %v153 = vld [vmem:[#allocation7 + $0x18] sm:$0xff]
    %v154 = vld [vmem:[#allocation7 + $0x20] sm:$0xff]
    %v155 = vld [vmem:[#allocation7 + $0x28] sm:$0xff]
    %v156 = vld [vmem:[#allocation7 + $0x30] sm:$0xff]
    %v157 = vld [vmem:[#allocation7 + $0x38] sm:$0xff]
    %v158 = vld [vmem:[#allocation7 + $0x40] sm:$0xff]
    %v159 = vld [vmem:[#allocation7 + $0x48] sm:$0xff]
    %v160 = vld [vmem:[#allocation7 + $0x50] sm:$0xff]
    %v161 = vld [vmem:[#allocation7 + $0x58] sm:$0xff]
    %v162 = vld [vmem:[#allocation7 + $0x60] sm:$0xff]
    %v163 = vld [vmem:[#allocation7 + $0x68] sm:$0xff]
    %v164 = vld [vmem:[#allocation7 + $0x70] sm:$0xff]
    %v165 = vld [vmem:[#allocation7 + $0x78] sm:$0xff]
    %v166 = vld [vmem:[#allocation7 + $0x80] sm:$0xff]
    %v167 = vld [vmem:[#allocation7 + $0x88] sm:$0xff]
    %v168 = vld [vmem:[#allocation7 + $0x90] sm:$0xff]
    %v169 = vld [vmem:[#allocation7 + $0x98] sm:$0xff]
    %v170 = vld [vmem:[#allocation7 + $0xa0] sm:$0xff]
    %v171 = vld [vmem:[#allocation7 + $0xa8] sm:$0xff]
    %v172 = vld [vmem:[#allocation7 + $0xb0] sm:$0xff]
    %v173 = vld [vmem:[#allocation7 + $0xb8] sm:$0xff]
    %v174 = vld [vmem:[#allocation7 + $0xc0] sm:$0xff]
    %v175 = vld [vmem:[#allocation7 + $0xc8] sm:$0xff]
    %v176 = vld [vmem:[#allocation7 + $0xd0] sm:$0xff]
    %v177 = vld [vmem:[#allocation7 + $0xd8] sm:$0xff]
    %v178 = vld [vmem:[#allocation7 + $0xe0] sm:$0xff]
    %v179 = vld [vmem:[#allocation7 + $0xe8] sm:$0xff]
    %v180 = vld [vmem:[#allocation7 + $0xf0] sm:$0xff]
    %v181 = vld [vmem:[#allocation7 + $0xf8] sm:$0xff]
    %v182 = vld [vmem:[%s4] sm:$0x1]
    %v184 = vlaneseq
    %v185 = vshrl.u32 %v184, 7
    %v186 = vsub.s32 0, %v185
    %v187 = vrot.slane %v182, %v186
    %189 = vmatprep.subr.mxu0 0.0
    %190 = vmatpush1.msra.mxu0 %v165
    %191 = vmatprep.subr.mxu0 0.0
    %192 = vmatpush1.msra.mxu0 %v164
    %193 = vmatprep.subr.mxu0 0.0
    %194 = vmatpush1.msra.mxu0 %v163
    %195 = vmatprep.subr.mxu0 0.0
    %196 = vmatpush1.msra.mxu0 %v162
    %197 = vmatprep.subr.mxu0 0.0
    %198 = vmatpush1.msra.mxu0 %v161
    %199 = vmatprep.subr.mxu0 0.0
    %200 = vmatpush1.msra.mxu0 %v160
    %201 = vmatprep.subr.mxu0 0.0
    %202 = vmatpush1.msra.mxu0 %v159
    %203 = vmatprep.subr.mxu0 0.0
    %204 = vmatpush1.msra.mxu0 %v158
    %205 = vmatprep.subr.mxu0 0.0
    %206 = vmatpush1.msra.mxu0 %v157
    %207 = vmatprep.subr.mxu0 0.0
    %208 = vmatpush1.msra.mxu0 %v156
    %209 = vmatprep.subr.mxu0 0.0
    %210 = vmatpush1.msra.mxu0 %v155
    %211 = vmatprep.subr.mxu0 0.0
    %212 = vmatpush1.msra.mxu0 %v154
    %213 = vmatprep.subr.mxu0 0.0
    %214 = vmatpush1.msra.mxu0 %v153
    %215 = vmatprep.subr.mxu0 0.0
    %216 = vmatpush1.msra.mxu0 %v152
    %217 = vmatprep.subr.mxu0 0.0
    %218 = vmatpush1.msra.mxu0 %v151
    %219 = vmatprep.subr.mxu0 0.0
    %220 = vmatpush1.msra.mxu0 %v150
    %221 = vmatprep.subr.mxu0 0.0
    %222 = vmatpush2.msra.mxu0 %v181
    %223 = vmatprep.subr.mxu0 0.0
    %224 = vmatpush2.msra.mxu0 %v180
    %225 = vmatprep.subr.mxu0 0.0
    %226 = vmatpush2.msra.mxu0 %v179
    %227 = vmatprep.subr.mxu0 0.0
    %228 = vmatpush2.msra.mxu0 %v178
    %229 = vmatprep.subr.mxu0 0.0
    %230 = vmatpush2.msra.mxu0 %v177
    %231 = vmatprep.subr.mxu0 0.0
    %232 = vmatpush2.msra.mxu0 %v176
    %233 = vmatprep.subr.mxu0 0.0
    %234 = vmatpush2.msra.mxu0 %v175
    %235 = vmatprep.subr.mxu0 0.0
    %236 = vmatpush2.msra.mxu0 %v174
    %237 = vmatprep.subr.mxu0 0.0
    %238 = vmatpush2.msra.mxu0 %v173
    %239 = vmatprep.subr.mxu0 0.0
    %240 = vmatpush2.msra.mxu0 %v172
    %241 = vmatprep.subr.mxu0 0.0
    %242 = vmatpush2.msra.mxu0 %v171
    %243 = vmatprep.subr.mxu0 0.0
    %244 = vmatpush2.msra.mxu0 %v170
    %245 = vmatprep.subr.mxu0 0.0
    %246 = vmatpush2.msra.mxu0 %v169
    %247 = vmatprep.subr.mxu0 0.0
    %248 = vmatpush2.msra.mxu0 %v168
    %249 = vmatprep.subr.mxu0 0.0
    %250 = vmatpush2.msra.mxu0 %v167
    %251 = vmatprep.subr.mxu0 0.0
    %252 = vmatpush2.msra.mxu0 %v166
    %253 = vmatprep.mubr.f32.mxu0 %v149
    %254 = vmatmul.mubr.f32.gmra.mxu0 %v148
    %v255 = vpop.f32.mrf.mxu0
    %v256 = vadd.f32 %v187, %v255
    %v257 = vpop.f32.mrf.mxu0
    %258 = vdwg.mxu0
    %259 = vxpose.xlu0.b32.start [1/16] %v256, 128
    %260 = vxpose.xlu0.b32.cont [2/16] 0.0, 128
    %261 = vxpose.xlu0.b32.cont [3/16] 0.0, 128
    %262 = vxpose.xlu0.b32.cont [4/16] 0.0, 128
    %263 = vxpose.xlu0.b32.cont [5/16] 0.0, 128
    %264 = vxpose.xlu0.b32.cont [6/16] 0.0, 128
    %265 = vxpose.xlu0.b32.cont [7/16] 0.0, 128
    %266 = vxpose.xlu0.b32.cont [8/16] 0.0, 128
    %267 = vxpose.xlu0.b32.cont [9/16] 0.0, 128
    %268 = vxpose.xlu0.b32.cont [10/16] 0.0, 128
    %269 = vxpose.xlu0.b32.cont [11/16] 0.0, 128
    %270 = vxpose.xlu0.b32.cont [12/16] 0.0, 128
    %271 = vxpose.xlu0.b32.cont [13/16] 0.0, 128
    %272 = vxpose.xlu0.b32.cont [14/16] 0.0, 128
    %273 = vxpose.xlu0.b32.cont [15/16] 0.0, 128
    %274 = vxpose.xlu0.b32.end [16/16] 0.0, 128
    %v275 = vpop.trf.xlu0
    %v276 = vpop.trf.xlu0
    %v277 = vpop.trf.xlu0
    %v278 = vpop.trf.xlu0
    %v279 = vpop.trf.xlu0
    %v280 = vpop.trf.xlu0
    %v281 = vpop.trf.xlu0
    %v282 = vpop.trf.xlu0
    %v283 = vpop.trf.xlu0
    %v284 = vpop.trf.xlu0
    %v285 = vpop.trf.xlu0
    %v286 = vpop.trf.xlu0
    %v287 = vpop.trf.xlu0
    %v288 = vpop.trf.xlu0
    %v289 = vpop.trf.xlu0
    %v290 = vpop.trf.xlu0
    %291 = vst.msk [vmem:[#allocation8] sm:$0xff] %vm73, %v275
    // Predicated region
    $region34: #{tpu_custom_call.1} parent=1 // pred_check
      _
    $region35: #{tpu_custom_call.1} parent=1 // pred_check_branch
      %293 = sbr.rel (0) target = $region37
    $region36: #{tpu_custom_call.1} parent=1 // pred_region
      %s295 = ssub.s32 128, 128
      %296 = vsyncadd [#allocation4], %s295
      %s298 = sshll.u32 [#allocation8], 4
      %s299 = int_to_ptr.vmem [resolvable:$true] %s298
      %301 = dma.vmem_to_hbm [thread:$0]  %s299, 128, %s5, [#allocation4]
    $region37: #{tpu_custom_call.1} parent=1 // pred_fallthru
      _
    // Predicated region
    $region38: #{tpu_custom_call.1} parent=1 // pred_check
      _
    $region39: #{tpu_custom_call.1} parent=1 // pred_check_branch
      %303 = sbr.rel (0) target = $region41
    $region40: #{tpu_custom_call.1} parent=1 // pred_region
      %304 = dma.done [#allocation4], 128
    $region41: #{tpu_custom_call.1} parent=1 // pred_fallthru
      _
    %305 = vsyncpa [#allocation3], 1
    %306 = vsyncpa [#allocation6], 1
    %307 = vsyncpa [#allocation4], 1

</llo_original>
